<compile_context>
chip_gen: v5e
topology: v5e:2x2
jax: 0.10.0
libtpu: 0.0.40
codegen_flags: <defaults>
</compile_context>

<pallas_src>
from functools import partial

import numpy as np
import jax
import jax.numpy as jnp
from jax.experimental import pallas as pl
from jax.experimental.pallas import tpu as pltpu

_BN_EPS = 1e-5
_NEG_SLOPE = 0.01          # nn.LeakyReLU() default


# ----------------------------------------------------------------------------
# Fused DownBlock kernel
# ----------------------------------------------------------------------------

def _downblock_kernel(x_ref, mask_ref,
                      w1_ref, b1_ref,
                      w2_ref, b2_ref,
                      o_ref, *, Wo, HoWo):
    """Per grid step (one batch element):
         x_ref   : (1, 4, Cin, Ho*Wo)  2x2 space-to-channel planes of the input
         mask_ref: (9, 1, Ho*Wo)       0/1 validity mask per conv tap (zero padding)
         w*_ref  : (Cout, 9*Cin) bf16  conv weights, BN scale folded in, K = taps*Cin
         b*_ref  : (Cout, 1)    f32    folded BatchNorm bias
         o_ref   : (1, Cout, Ho*Wo)
    """
    x = x_ref[0]                                               # (4, Cin, HoWo) f32

    # --- 2x2 / stride-2 max pool: elementwise max over the 4 s2c planes ------
    pooled = jnp.maximum(jnp.maximum(x[0], x[1]),
                         jnp.maximum(x[2], x[3]))              # (Cin, HoWo) f32

    # Load the 9 tap masks once (shared by both convs; same spatial dims).
    masks = [mask_ref[t] for t in range(9)]                    # each (1, HoWo)

    # --- conv3x3 (pad=1) + folded-BN bias + LeakyReLU as one K=9*C matmul ----
    def conv3x3_bn_lrelu(a, w_ref, b_ref):
        taps = []
        t = 0
        for dy in (-1, 0, 1):
            for dx in (-1, 0, 1):
                off = dy * Wo + dx
                # out[p] = a[p + off]; static-shift roll = slice + lane concat.
                shifted = a if off == 0 else jnp.roll(a, shift=(-off) % HoWo, axis=1)
                taps.append(shifted * masks[t])                # zero at the borders
                t += 1
        patches = jnp.concatenate(taps, axis=0)                # (9*C, HoWo) f32
        y = jnp.dot(w_ref[...], patches.astype(jnp.bfloat16),
                    preferred_element_type=jnp.float32)        # (Cout, HoWo) f32
        y = y + b_ref[...]                                     # folded BN bias
        return jnp.where(y >= 0, y, jnp.float32(_NEG_SLOPE) * y)

    a1 = conv3x3_bn_lrelu(pooled, w1_ref, b1_ref)
    # Dropout (eval mode) == identity.
    a2 = conv3x3_bn_lrelu(a1, w2_ref, b2_ref)
    o_ref[0] = a2.astype(o_ref.dtype)


# ----------------------------------------------------------------------------
# Host-side constants (built once, tiny)
# ----------------------------------------------------------------------------

def _tap_masks(Ho, Wo):
    """(9, 1, Ho*Wo) 0/1 masks: tap (dy, dx) is valid iff the shifted position
       stays inside the image (emulates zero padding of conv3x3, padding=1)."""
    r = np.arange(Ho)[:, None]
    c = np.arange(Wo)[None, :]
    masks = []
    for dy in (-1, 0, 1):
        for dx in (-1, 0, 1):
            valid = (r + dy >= 0) & (r + dy < Ho) & (c + dx >= 0) & (c + dx < Wo)
            masks.append(valid.astype(np.float32).reshape(1, Ho * Wo))
    return np.stack(masks, axis=0)


# ----------------------------------------------------------------------------
# Wrapper
# ----------------------------------------------------------------------------

def downblock_forward(x, params):
    """x: (N, Cin, H, W) NCHW float32.  Returns (N, Cout, H//2, W//2)."""
    N, Cin, H, W = x.shape
    assert H % 2 == 0 and W % 2 == 0
    Cout = params["b1"].shape[0]
    Ho, Wo = H // 2, W // 2
    HoWo = Ho * Wo

    # 2x2 space-to-channel rearrangement: plane (dy, dx) holds x[:, :, 2h+dy, 2w+dx].
    xs2c = jnp.transpose(x.reshape(N, Cin, Ho, 2, Wo, 2),
                         (0, 3, 5, 1, 2, 4)).reshape(N, 4, Cin, HoWo)
    masks = jnp.asarray(_tap_masks(Ho, Wo))

    out = pl.pallas_call(
        partial(_downblock_kernel, Wo=Wo, HoWo=HoWo),
        out_shape=jax.ShapeDtypeStruct((N, Cout, HoWo), jnp.float32),
        grid=(N,),
        in_specs=[
            pl.BlockSpec((1, 4, Cin, HoWo), lambda n: (n, 0, 0, 0)),
            pl.BlockSpec((9, 1, HoWo), lambda n: (0, 0, 0)),
            pl.BlockSpec((Cout, 9 * Cin), lambda n: (0, 0)),
            pl.BlockSpec((Cout, 1), lambda n: (0, 0)),
            pl.BlockSpec((Cout, 9 * Cout), lambda n: (0, 0)),
            pl.BlockSpec((Cout, 1), lambda n: (0, 0)),
        ],
        out_specs=pl.BlockSpec((1, Cout, HoWo), lambda n: (n, 0, 0)),
        compiler_params=pltpu.CompilerParams(
            dimension_semantics=("parallel",)),
    )(xs2c, masks,
      params["w1"], params["b1"],
      params["w2"], params["b2"])
    return out.reshape(N, Cout, Ho, Wo)


# ----------------------------------------------------------------------------
# Parameter construction (deterministic, synthetic) + plain-XLA reference
# ----------------------------------------------------------------------------

class _KeyGen:
    def __init__(self, key):
        self._key = key

    def __call__(self):
        self._key, sub = jax.random.split(self._key)
        return sub


def _init_conv_bn(kg, cin, cout):
    return dict(
        w=jax.random.normal(kg(), (cout, cin, 3, 3), jnp.float32) * 0.1,   # OIHW
        b=jax.random.normal(kg(), (cout,), jnp.float32) * 0.1,
        gamma=jax.random.uniform(kg(), (cout,), jnp.float32, minval=0.5, maxval=1.5),
        beta=jax.random.normal(kg(), (cout,), jnp.float32) * 0.1,
        mean=jax.random.normal(kg(), (cout,), jnp.float32) * 0.1,
        var=jax.random.uniform(kg(), (cout,), jnp.float32, minval=0.5, maxval=1.5),
    )


def _fold(raw):
    """Fold eval-mode BN into the conv: scale into the (bf16) weights, rest into bias."""
    cout, cin = raw["w"].shape[:2]
    scale = raw["gamma"] / jnp.sqrt(raw["var"] + _BN_EPS)                  # (cout,)
    bias = raw["beta"] + scale * (raw["b"] - raw["mean"])                  # (cout,)
    w_scaled = raw["w"] * scale[:, None, None, None]
    # (O, I, kh, kw) -> (O, kh*kw*I): matches the in-kernel tap-major patch order.
    wmat = jnp.transpose(w_scaled, (0, 2, 3, 1)).reshape(cout, 9 * cin)
    return wmat.astype(jnp.bfloat16), bias.reshape(cout, 1).astype(jnp.float32)


def init_downblock(key, in_channels, out_channels):
    kg = _KeyGen(key)
    raw1 = _init_conv_bn(kg, in_channels, out_channels)
    raw2 = _init_conv_bn(kg, out_channels, out_channels)
    w1, b1 = _fold(raw1)
    w2, b2 = _fold(raw2)
    return dict(w1=w1, b1=b1, w2=w2, b2=b2), (raw1, raw2)


def _reference_forward(x, raw1, raw2):
    """Plain-XLA DownBlock (eval mode) for a structural sanity check."""
    def conv_bn_lrelu(a, raw):
        y = jax.lax.conv_general_dilated(
            a, raw["w"], window_strides=(1, 1), padding=((1, 1), (1, 1)),
            dimension_numbers=("NCHW", "OIHW", "NCHW"))
        y = y + raw["b"][None, :, None, None]
        y = (y - raw["mean"][None, :, None, None]) * (
            raw["gamma"][None, :, None, None]
            / jnp.sqrt(raw["var"][None, :, None, None] + _BN_EPS)
        ) + raw["beta"][None, :, None, None]
        return jnp.where(y >= 0, y, _NEG_SLOPE * y)

    p = jax.lax.reduce_window(x, -jnp.inf, jax.lax.max,
                              (1, 1, 2, 2), (1, 1, 2, 2), "VALID")
    return conv_bn_lrelu(conv_bn_lrelu(p, raw1), raw2)


# ----------------------------------------------------------------------------
# Main
# ----------------------------------------------------------------------------

if __name__ == "__main__":
    key = jax.random.PRNGKey(0)
    kx, kp = jax.random.split(key)

    # Small DownBlock config: 8 -> 16 channels, 32x32 input (pooled to 16x16,
    # so the flattened pooled spatial lane dim 256 is a multiple of 128).
    N, Cin, Cout, H, W = 2, 8, 16, 32, 32
    dropout_p = 0.5            # Dropout is identity in inference mode.

    x = jax.random.normal(kx, (N, Cin, H, W), jnp.float32)
    params, (raw1, raw2) = init_downblock(kp, Cin, Cout)

    out = jax.jit(downblock_forward)(x, params)
    out = jax.block_until_ready(out)

    assert out.shape == (N, Cout, H // 2, W // 2), out.shape
    assert bool(jnp.all(jnp.isfinite(out)))

    # Structural sanity check vs. plain XLA (loose bound: the kernel feeds bf16
    # to the MXU while the reference runs f32 convs).
    ref = _reference_forward(x, raw1, raw2)
    max_err = float(jnp.max(jnp.abs(out - ref)))
    assert max_err < 0.25, max_err

    print("KERNEL_OK")
</pallas_src>

<mosaic_0001>
module attributes {stable_mosaic.version = 11 : i64} {
  func.func @_downblock_kernel(%arg0: i32, %arg1: memref<1x4x8x256xf32, #tpu.memory_space<vmem>>, %arg2: memref<9x1x256xf32, #tpu.memory_space<vmem>>, %arg3: memref<16x72xbf16, #tpu.memory_space<vmem>>, %arg4: memref<16x1xf32, #tpu.memory_space<vmem>>, %arg5: memref<16x144xbf16, #tpu.memory_space<vmem>>, %arg6: memref<16x1xf32, #tpu.memory_space<vmem>>, %arg7: memref<1x16x256xf32, #tpu.memory_space<vmem>>) attributes {dimension_semantics = [#tpu.dimension_semantics<parallel>], iteration_bounds = array<i64: 2>, scalar_prefetch = 0 : i64, scratch_operands = 0 : i64, tpu.core_type = #tpu.core_type<tc>, window_params = [{transform_indices = @transform_0, window_bounds = array<i64: 1, 4, 8, 256>}, {pipeline_mode = #tpu.pipeline_mode<synchronous>, transform_indices = @transform_1, window_bounds = array<i64: 9, 1, 256>}, {pipeline_mode = #tpu.pipeline_mode<synchronous>, transform_indices = @transform_2, window_bounds = array<i64: 16, 72>}, {pipeline_mode = #tpu.pipeline_mode<synchronous>, transform_indices = @transform_3, window_bounds = array<i64: 16, 1>}, {pipeline_mode = #tpu.pipeline_mode<synchronous>, transform_indices = @transform_4, window_bounds = array<i64: 16, 144>}, {pipeline_mode = #tpu.pipeline_mode<synchronous>, transform_indices = @transform_5, window_bounds = array<i64: 16, 1>}, {transform_indices = @transform_6, window_bounds = array<i64: 1, 16, 256>}]} {
    %c0 = arith.constant 0 : index
    %c0_0 = arith.constant 0 : index
    %c0_1 = arith.constant 0 : index
    %c0_2 = arith.constant 0 : index
    %0 = vector.load %arg1[%c0, %c0_0, %c0_1, %c0_2] : memref<1x4x8x256xf32, #tpu.memory_space<vmem>>, vector<1x4x8x256xf32>
    %1 = vector.shape_cast %0 : vector<1x4x8x256xf32> to vector<4x8x256xf32>
    %2 = vector.extract_strided_slice %1 {offsets = [0, 0, 0], sizes = [1, 8, 256], strides = [1, 1, 1]} : vector<4x8x256xf32> to vector<1x8x256xf32>
    %3 = vector.shape_cast %2 : vector<1x8x256xf32> to vector<8x256xf32>
    %4 = vector.extract_strided_slice %1 {offsets = [1, 0, 0], sizes = [1, 8, 256], strides = [1, 1, 1]} : vector<4x8x256xf32> to vector<1x8x256xf32>
    %5 = vector.shape_cast %4 : vector<1x8x256xf32> to vector<8x256xf32>
    %6 = arith.maximumf %3, %5 : vector<8x256xf32>
    %7 = vector.extract_strided_slice %1 {offsets = [2, 0, 0], sizes = [1, 8, 256], strides = [1, 1, 1]} : vector<4x8x256xf32> to vector<1x8x256xf32>
    %8 = vector.shape_cast %7 : vector<1x8x256xf32> to vector<8x256xf32>
    %9 = vector.extract_strided_slice %1 {offsets = [3, 0, 0], sizes = [1, 8, 256], strides = [1, 1, 1]} : vector<4x8x256xf32> to vector<1x8x256xf32>
    %10 = vector.shape_cast %9 : vector<1x8x256xf32> to vector<8x256xf32>
    %11 = arith.maximumf %8, %10 : vector<8x256xf32>
    %12 = arith.maximumf %6, %11 : vector<8x256xf32>
    %c0_3 = arith.constant 0 : index
    %c0_4 = arith.constant 0 : index
    %c0_5 = arith.constant 0 : index
    %13 = vector.load %arg2[%c0_3, %c0_4, %c0_5] : memref<9x1x256xf32, #tpu.memory_space<vmem>>, vector<1x1x256xf32>
    %14 = vector.shape_cast %13 : vector<1x1x256xf32> to vector<1x256xf32>
    %c1 = arith.constant 1 : index
    %c0_6 = arith.constant 0 : index
    %c0_7 = arith.constant 0 : index
    %15 = vector.load %arg2[%c1, %c0_6, %c0_7] : memref<9x1x256xf32, #tpu.memory_space<vmem>>, vector<1x1x256xf32>
    %16 = vector.shape_cast %15 : vector<1x1x256xf32> to vector<1x256xf32>
    %c2 = arith.constant 2 : index
    %c0_8 = arith.constant 0 : index
    %c0_9 = arith.constant 0 : index
    %17 = vector.load %arg2[%c2, %c0_8, %c0_9] : memref<9x1x256xf32, #tpu.memory_space<vmem>>, vector<1x1x256xf32>
    %18 = vector.shape_cast %17 : vector<1x1x256xf32> to vector<1x256xf32>
    %c3 = arith.constant 3 : index
    %c0_10 = arith.constant 0 : index
    %c0_11 = arith.constant 0 : index
    %19 = vector.load %arg2[%c3, %c0_10, %c0_11] : memref<9x1x256xf32, #tpu.memory_space<vmem>>, vector<1x1x256xf32>
    %20 = vector.shape_cast %19 : vector<1x1x256xf32> to vector<1x256xf32>
    %c4 = arith.constant 4 : index
    %c0_12 = arith.constant 0 : index
    %c0_13 = arith.constant 0 : index
    %21 = vector.load %arg2[%c4, %c0_12, %c0_13] : memref<9x1x256xf32, #tpu.memory_space<vmem>>, vector<1x1x256xf32>
    %22 = vector.shape_cast %21 : vector<1x1x256xf32> to vector<1x256xf32>
    %c5 = arith.constant 5 : index
    %c0_14 = arith.constant 0 : index
    %c0_15 = arith.constant 0 : index
    %23 = vector.load %arg2[%c5, %c0_14, %c0_15] : memref<9x1x256xf32, #tpu.memory_space<vmem>>, vector<1x1x256xf32>
    %24 = vector.shape_cast %23 : vector<1x1x256xf32> to vector<1x256xf32>
    %c6 = arith.constant 6 : index
    %c0_16 = arith.constant 0 : index
    %c0_17 = arith.constant 0 : index
    %25 = vector.load %arg2[%c6, %c0_16, %c0_17] : memref<9x1x256xf32, #tpu.memory_space<vmem>>, vector<1x1x256xf32>
    %26 = vector.shape_cast %25 : vector<1x1x256xf32> to vector<1x256xf32>
    %c7 = arith.constant 7 : index
    %c0_18 = arith.constant 0 : index
    %c0_19 = arith.constant 0 : index
    %27 = vector.load %arg2[%c7, %c0_18, %c0_19] : memref<9x1x256xf32, #tpu.memory_space<vmem>>, vector<1x1x256xf32>
    %28 = vector.shape_cast %27 : vector<1x1x256xf32> to vector<1x256xf32>
    %c8 = arith.constant 8 : index
    %c0_20 = arith.constant 0 : index
    %c0_21 = arith.constant 0 : index
    %29 = vector.load %arg2[%c8, %c0_20, %c0_21] : memref<9x1x256xf32, #tpu.memory_space<vmem>>, vector<1x1x256xf32>
    %30 = vector.shape_cast %29 : vector<1x1x256xf32> to vector<1x256xf32>
    %31 = vector.extract_strided_slice %12 {offsets = [0, 239], sizes = [8, 17], strides = [1, 1]} : vector<8x256xf32> to vector<8x17xf32>
    %32 = vector.extract_strided_slice %12 {offsets = [0, 0], sizes = [8, 239], strides = [1, 1]} : vector<8x256xf32> to vector<8x239xf32>
    %33 = tpu.concatenate %31, %32 in 1 : vector<8x17xf32>, vector<8x239xf32> -> vector<8x256xf32>
    %34 = vector.broadcast %14 : vector<1x256xf32> to vector<8x256xf32>
    %35 = arith.mulf %33, %34 : vector<8x256xf32>
    %36 = vector.extract_strided_slice %12 {offsets = [0, 240], sizes = [8, 16], strides = [1, 1]} : vector<8x256xf32> to vector<8x16xf32>
    %37 = vector.extract_strided_slice %12 {offsets = [0, 0], sizes = [8, 240], strides = [1, 1]} : vector<8x256xf32> to vector<8x240xf32>
    %38 = tpu.concatenate %36, %37 in 1 : vector<8x16xf32>, vector<8x240xf32> -> vector<8x256xf32>
    %39 = vector.broadcast %16 : vector<1x256xf32> to vector<8x256xf32>
    %40 = arith.mulf %38, %39 : vector<8x256xf32>
    %41 = vector.extract_strided_slice %12 {offsets = [0, 241], sizes = [8, 15], strides = [1, 1]} : vector<8x256xf32> to vector<8x15xf32>
    %42 = vector.extract_strided_slice %12 {offsets = [0, 0], sizes = [8, 241], strides = [1, 1]} : vector<8x256xf32> to vector<8x241xf32>
    %43 = tpu.concatenate %41, %42 in 1 : vector<8x15xf32>, vector<8x241xf32> -> vector<8x256xf32>
    %44 = vector.broadcast %18 : vector<1x256xf32> to vector<8x256xf32>
    %45 = arith.mulf %43, %44 : vector<8x256xf32>
    %46 = vector.extract_strided_slice %12 {offsets = [0, 255], sizes = [8, 1], strides = [1, 1]} : vector<8x256xf32> to vector<8x1xf32>
    %47 = vector.extract_strided_slice %12 {offsets = [0, 0], sizes = [8, 255], strides = [1, 1]} : vector<8x256xf32> to vector<8x255xf32>
    %48 = tpu.concatenate %46, %47 in 1 : vector<8x1xf32>, vector<8x255xf32> -> vector<8x256xf32>
    %49 = vector.broadcast %20 : vector<1x256xf32> to vector<8x256xf32>
    %50 = arith.mulf %48, %49 : vector<8x256xf32>
    %51 = vector.broadcast %22 : vector<1x256xf32> to vector<8x256xf32>
    %52 = arith.mulf %12, %51 : vector<8x256xf32>
    %53 = vector.extract_strided_slice %12 {offsets = [0, 1], sizes = [8, 255], strides = [1, 1]} : vector<8x256xf32> to vector<8x255xf32>
    %54 = vector.extract_strided_slice %12 {offsets = [0, 0], sizes = [8, 1], strides = [1, 1]} : vector<8x256xf32> to vector<8x1xf32>
    %55 = tpu.concatenate %53, %54 in 1 : vector<8x255xf32>, vector<8x1xf32> -> vector<8x256xf32>
    %56 = vector.broadcast %24 : vector<1x256xf32> to vector<8x256xf32>
    %57 = arith.mulf %55, %56 : vector<8x256xf32>
    %58 = vector.extract_strided_slice %12 {offsets = [0, 15], sizes = [8, 241], strides = [1, 1]} : vector<8x256xf32> to vector<8x241xf32>
    %59 = vector.extract_strided_slice %12 {offsets = [0, 0], sizes = [8, 15], strides = [1, 1]} : vector<8x256xf32> to vector<8x15xf32>
    %60 = tpu.concatenate %58, %59 in 1 : vector<8x241xf32>, vector<8x15xf32> -> vector<8x256xf32>
    %61 = vector.broadcast %26 : vector<1x256xf32> to vector<8x256xf32>
    %62 = arith.mulf %60, %61 : vector<8x256xf32>
    %63 = vector.extract_strided_slice %12 {offsets = [0, 16], sizes = [8, 240], strides = [1, 1]} : vector<8x256xf32> to vector<8x240xf32>
    %64 = vector.extract_strided_slice %12 {offsets = [0, 0], sizes = [8, 16], strides = [1, 1]} : vector<8x256xf32> to vector<8x16xf32>
    %65 = tpu.concatenate %63, %64 in 1 : vector<8x240xf32>, vector<8x16xf32> -> vector<8x256xf32>
    %66 = vector.broadcast %28 : vector<1x256xf32> to vector<8x256xf32>
    %67 = arith.mulf %65, %66 : vector<8x256xf32>
    %68 = vector.extract_strided_slice %12 {offsets = [0, 17], sizes = [8, 239], strides = [1, 1]} : vector<8x256xf32> to vector<8x239xf32>
    %69 = vector.extract_strided_slice %12 {offsets = [0, 0], sizes = [8, 17], strides = [1, 1]} : vector<8x256xf32> to vector<8x17xf32>
    %70 = tpu.concatenate %68, %69 in 1 : vector<8x239xf32>, vector<8x17xf32> -> vector<8x256xf32>
    %71 = vector.broadcast %30 : vector<1x256xf32> to vector<8x256xf32>
    %72 = arith.mulf %70, %71 : vector<8x256xf32>
    %73 = tpu.concatenate %35, %40, %45, %50, %52, %57, %62, %67, %72 in 0 : vector<8x256xf32>, vector<8x256xf32>, vector<8x256xf32>, vector<8x256xf32>, vector<8x256xf32>, vector<8x256xf32>, vector<8x256xf32>, vector<8x256xf32>, vector<8x256xf32> -> vector<72x256xf32>
    %c0_22 = arith.constant 0 : index
    %c0_23 = arith.constant 0 : index
    %74 = vector.load %arg3[%c0_22, %c0_23] : memref<16x72xbf16, #tpu.memory_space<vmem>>, vector<16x72xbf16>
    %75 = arith.truncf %73 : vector<72x256xf32> to vector<72x256xbf16>
    %cst = arith.constant dense<0.000000e+00> : vector<16x256xf32>
    %76 = tpu.matmul %74, %75, %cst {dimension_numbers = #tpu.dot_dimension_numbers<[1], [0], [0], [1], [0, 0, 1, 1], [], []>} : vector<16x72xbf16>, vector<72x256xbf16>, vector<16x256xf32> -> vector<16x256xf32>
    %c0_24 = arith.constant 0 : index
    %c0_25 = arith.constant 0 : index
    %77 = vector.load %arg4[%c0_24, %c0_25] : memref<16x1xf32, #tpu.memory_space<vmem>>, vector<16x1xf32>
    %78 = vector.broadcast %77 : vector<16x1xf32> to vector<16x256xf32>
    %79 = arith.addf %76, %78 : vector<16x256xf32>
    %cst_26 = arith.constant 0.000000e+00 : f32
    %80 = vector.broadcast %cst_26 : f32 to vector<16x256xf32>
    %81 = arith.cmpf oge, %79, %80 : vector<16x256xf32>
    %cst_27 = arith.constant 0.00999999977 : f32
    %82 = vector.broadcast %cst_27 : f32 to vector<16x256xf32>
    %83 = arith.mulf %82, %79 : vector<16x256xf32>
    %84 = arith.select %81, %79, %83 : vector<16x256xi1>, vector<16x256xf32>
    %85 = vector.extract_strided_slice %84 {offsets = [0, 239], sizes = [16, 17], strides = [1, 1]} : vector<16x256xf32> to vector<16x17xf32>
    %86 = vector.extract_strided_slice %84 {offsets = [0, 0], sizes = [16, 239], strides = [1, 1]} : vector<16x256xf32> to vector<16x239xf32>
    %87 = tpu.concatenate %85, %86 in 1 : vector<16x17xf32>, vector<16x239xf32> -> vector<16x256xf32>
    %88 = vector.broadcast %14 : vector<1x256xf32> to vector<16x256xf32>
    %89 = arith.mulf %87, %88 : vector<16x256xf32>
    %90 = vector.extract_strided_slice %84 {offsets = [0, 240], sizes = [16, 16], strides = [1, 1]} : vector<16x256xf32> to vector<16x16xf32>
    %91 = vector.extract_strided_slice %84 {offsets = [0, 0], sizes = [16, 240], strides = [1, 1]} : vector<16x256xf32> to vector<16x240xf32>
    %92 = tpu.concatenate %90, %91 in 1 : vector<16x16xf32>, vector<16x240xf32> -> vector<16x256xf32>
    %93 = vector.broadcast %16 : vector<1x256xf32> to vector<16x256xf32>
    %94 = arith.mulf %92, %93 : vector<16x256xf32>
    %95 = vector.extract_strided_slice %84 {offsets = [0, 241], sizes = [16, 15], strides = [1, 1]} : vector<16x256xf32> to vector<16x15xf32>
    %96 = vector.extract_strided_slice %84 {offsets = [0, 0], sizes = [16, 241], strides = [1, 1]} : vector<16x256xf32> to vector<16x241xf32>
    %97 = tpu.concatenate %95, %96 in 1 : vector<16x15xf32>, vector<16x241xf32> -> vector<16x256xf32>
    %98 = vector.broadcast %18 : vector<1x256xf32> to vector<16x256xf32>
    %99 = arith.mulf %97, %98 : vector<16x256xf32>
    %100 = vector.extract_strided_slice %84 {offsets = [0, 255], sizes = [16, 1], strides = [1, 1]} : vector<16x256xf32> to vector<16x1xf32>
    %101 = vector.extract_strided_slice %84 {offsets = [0, 0], sizes = [16, 255], strides = [1, 1]} : vector<16x256xf32> to vector<16x255xf32>
    %102 = tpu.concatenate %100, %101 in 1 : vector<16x1xf32>, vector<16x255xf32> -> vector<16x256xf32>
    %103 = vector.broadcast %20 : vector<1x256xf32> to vector<16x256xf32>
    %104 = arith.mulf %102, %103 : vector<16x256xf32>
    %105 = vector.broadcast %22 : vector<1x256xf32> to vector<16x256xf32>
    %106 = arith.mulf %84, %105 : vector<16x256xf32>
    %107 = vector.extract_strided_slice %84 {offsets = [0, 1], sizes = [16, 255], strides = [1, 1]} : vector<16x256xf32> to vector<16x255xf32>
    %108 = vector.extract_strided_slice %84 {offsets = [0, 0], sizes = [16, 1], strides = [1, 1]} : vector<16x256xf32> to vector<16x1xf32>
    %109 = tpu.concatenate %107, %108 in 1 : vector<16x255xf32>, vector<16x1xf32> -> vector<16x256xf32>
    %110 = vector.broadcast %24 : vector<1x256xf32> to vector<16x256xf32>
    %111 = arith.mulf %109, %110 : vector<16x256xf32>
    %112 = vector.extract_strided_slice %84 {offsets = [0, 15], sizes = [16, 241], strides = [1, 1]} : vector<16x256xf32> to vector<16x241xf32>
    %113 = vector.extract_strided_slice %84 {offsets = [0, 0], sizes = [16, 15], strides = [1, 1]} : vector<16x256xf32> to vector<16x15xf32>
    %114 = tpu.concatenate %112, %113 in 1 : vector<16x241xf32>, vector<16x15xf32> -> vector<16x256xf32>
    %115 = vector.broadcast %26 : vector<1x256xf32> to vector<16x256xf32>
    %116 = arith.mulf %114, %115 : vector<16x256xf32>
    %117 = vector.extract_strided_slice %84 {offsets = [0, 16], sizes = [16, 240], strides = [1, 1]} : vector<16x256xf32> to vector<16x240xf32>
    %118 = vector.extract_strided_slice %84 {offsets = [0, 0], sizes = [16, 16], strides = [1, 1]} : vector<16x256xf32> to vector<16x16xf32>
    %119 = tpu.concatenate %117, %118 in 1 : vector<16x240xf32>, vector<16x16xf32> -> vector<16x256xf32>
    %120 = vector.broadcast %28 : vector<1x256xf32> to vector<16x256xf32>
    %121 = arith.mulf %119, %120 : vector<16x256xf32>
    %122 = vector.extract_strided_slice %84 {offsets = [0, 17], sizes = [16, 239], strides = [1, 1]} : vector<16x256xf32> to vector<16x239xf32>
    %123 = vector.extract_strided_slice %84 {offsets = [0, 0], sizes = [16, 17], strides = [1, 1]} : vector<16x256xf32> to vector<16x17xf32>
    %124 = tpu.concatenate %122, %123 in 1 : vector<16x239xf32>, vector<16x17xf32> -> vector<16x256xf32>
    %125 = vector.broadcast %30 : vector<1x256xf32> to vector<16x256xf32>
    %126 = arith.mulf %124, %125 : vector<16x256xf32>
    %127 = tpu.concatenate %89, %94, %99, %104, %106, %111, %116, %121, %126 in 0 : vector<16x256xf32>, vector<16x256xf32>, vector<16x256xf32>, vector<16x256xf32>, vector<16x256xf32>, vector<16x256xf32>, vector<16x256xf32>, vector<16x256xf32>, vector<16x256xf32> -> vector<144x256xf32>
    %c0_28 = arith.constant 0 : index
    %c0_29 = arith.constant 0 : index
    %128 = vector.load %arg5[%c0_28, %c0_29] : memref<16x144xbf16, #tpu.memory_space<vmem>>, vector<16x144xbf16>
    %129 = arith.truncf %127 : vector<144x256xf32> to vector<144x256xbf16>
    %cst_30 = arith.constant dense<0.000000e+00> : vector<16x256xf32>
    %130 = tpu.matmul %128, %129, %cst_30 {dimension_numbers = #tpu.dot_dimension_numbers<[1], [0], [0], [1], [0, 0, 1, 1], [], []>} : vector<16x144xbf16>, vector<144x256xbf16>, vector<16x256xf32> -> vector<16x256xf32>
    %c0_31 = arith.constant 0 : index
    %c0_32 = arith.constant 0 : index
    %131 = vector.load %arg6[%c0_31, %c0_32] : memref<16x1xf32, #tpu.memory_space<vmem>>, vector<16x1xf32>
    %132 = vector.broadcast %131 : vector<16x1xf32> to vector<16x256xf32>
    %133 = arith.addf %130, %132 : vector<16x256xf32>
    %cst_33 = arith.constant 0.000000e+00 : f32
    %134 = vector.broadcast %cst_33 : f32 to vector<16x256xf32>
    %135 = arith.cmpf oge, %133, %134 : vector<16x256xf32>
    %cst_34 = arith.constant 0.00999999977 : f32
    %136 = vector.broadcast %cst_34 : f32 to vector<16x256xf32>
    %137 = arith.mulf %136, %133 : vector<16x256xf32>
    %138 = arith.select %135, %133, %137 : vector<16x256xi1>, vector<16x256xf32>
    %c0_35 = arith.constant 0 : index
    %c0_36 = arith.constant 0 : index
    %c0_37 = arith.constant 0 : index
    %139 = vector.load %arg7[%c0_35, %c0_36, %c0_37] : memref<1x16x256xf32, #tpu.memory_space<vmem>>, vector<1x16x256xf32>
    %140 = vector.shape_cast %139 : vector<1x16x256xf32> to vector<16x256xf32>
    %141 = vector.shape_cast %138 : vector<16x256xf32> to vector<1x16x256xf32>
    tpu.vector_store %arg7[%c0_35, %c0_36, %c0_37], %141 {strides = array<i32>} : memref<1x16x256xf32, #tpu.memory_space<vmem>>, vector<1x16x256xf32>,
    return
  }
  func.func @transform_0(%arg0: i32) -> (i32, i32, i32, i32) {
    %c0_i32 = arith.constant 0 : i32
    %c0_i32_0 = arith.constant 0 : i32
    %c0_i32_1 = arith.constant 0 : i32
    %c0_i32_2 = arith.constant 0 : i32
    return %arg0, %c0_i32, %c0_i32_0, %c0_i32_1 : i32, i32, i32, i32
  }
  func.func @transform_1(%arg0: i32) -> (i32, i32, i32) {
    %c0_i32 = arith.constant 0 : i32
    %c0_i32_0 = arith.constant 0 : i32
    %c0_i32_1 = arith.constant 0 : i32
    %c0_i32_2 = arith.constant 0 : i32
    return %c0_i32, %c0_i32_0, %c0_i32_1 : i32, i32, i32
  }
  func.func @transform_2(%arg0: i32) -> (i32, i32) {
    %c0_i32 = arith.constant 0 : i32
    %c0_i32_0 = arith.constant 0 : i32
    %c0_i32_1 = arith.constant 0 : i32
    return %c0_i32, %c0_i32_0 : i32, i32
  }
  func.func @transform_3(%arg0: i32) -> (i32, i32) {
    %c0_i32 = arith.constant 0 : i32
    %c0_i32_0 = arith.constant 0 : i32
    %c0_i32_1 = arith.constant 0 : i32
    return %c0_i32, %c0_i32_0 : i32, i32
  }
  func.func @transform_4(%arg0: i32) -> (i32, i32) {
    %c0_i32 = arith.constant 0 : i32
    %c0_i32_0 = arith.constant 0 : i32
    %c0_i32_1 = arith.constant 0 : i32
    return %c0_i32, %c0_i32_0 : i32, i32
  }
  func.func @transform_5(%arg0: i32) -> (i32, i32) {
    %c0_i32 = arith.constant 0 : i32
    %c0_i32_0 = arith.constant 0 : i32
    %c0_i32_1 = arith.constant 0 : i32
    return %c0_i32, %c0_i32_0 : i32, i32
  }
  func.func @transform_6(%arg0: i32) -> (i32, i32, i32) {
    %c0_i32 = arith.constant 0 : i32
    %c0_i32_0 = arith.constant 0 : i32
    %c0_i32_1 = arith.constant 0 : i32
    return %arg0, %c0_i32, %c0_i32_0 : i32, i32, i32
  }
}

</mosaic_0001>

<llo_original>
// kernel: downblock_forward.1
$region0: #{downblock_forward.1}
  #allocation0 [shape = 'u32[]', space=smem, size = 0x4, offset = 0x4, fixed_abs, tag = 'smem constant byte address 0x4 - core index']
  #allocation1 [shape = 'u32[72,128]{1,0:T(1,128)}', space=vmem, size = 0x9000, scoped, tag = 'internal scratch']
  %s0 = inlined_call_operand.vmem [shape: f32[2,4,8,256], index: 0, kind: input, shape index: {}]
  %s1 = inlined_call_operand.vmem [shape: f32[9,1,256], index: 1, kind: input, shape index: {}]
  %s2 = inlined_call_operand.vmem [shape: bf16[16,72], index: 2, kind: input, shape index: {}]
  %s3 = inlined_call_operand.vmem [shape: f32[16,1], index: 3, kind: input, shape index: {}]
  %s4 = inlined_call_operand.vmem [shape: bf16[16,144], index: 4, kind: input, shape index: {}]
  %s5 = inlined_call_operand.vmem [shape: f32[16,1], index: 5, kind: input, shape index: {}]
  %s6 = inlined_call_operand.vmem [shape: f32[2,16,256], index: 6, kind: output, shape index: {}]
  %s7 = sld [smem:[#allocation0]]
  $region57: #{downblock_forward.1} parent=0
    _
  %s9 = ssub.s32 1, %s7
  %s10 = scalar_select 0, %s9, %s7
  loop: start=0, step=1, limit=4
  $region2: #{downblock_forward.1} parent=0 // loop_pre_header
    _
  $region3: #{downblock_forward.1} parent=0 // loop_header
    %s12 = sphi 0, %s16
    %p13 = scmp.ge.s32.totalorder %s12, 4
    %s22 = sphi 0, %s24
    %s25 = sphi 0, %s22
    %s26 = sphi 0, %s25
    %s42 = sphi 0, %s26
    %s46 = sphi 0, %s46
    %s48 = sphi 0, %s46
    %s49 = sphi 0, %s48
    %s63 = sphi 0, %s49
    %s67 = sphi 0, %s67
    %s69 = sphi 0, %s67
    %s70 = sphi 0, %s69
    %s84 = sphi 0, %s70
    %s88 = sphi 0, %s88
    %s90 = sphi 0, %s88
    %s91 = sphi 0, %s90
    %s105 = sphi 0, %s91
    %s109 = sphi 0, %s109
    %s111 = sphi 0, %s109
    %s112 = sphi 0, %s111
    %s126 = sphi 0, %s112
    %s130 = sphi 0, %s130
    %s132 = sphi 0, %s130
    %s133 = sphi 0, %s132
    %s147 = sphi 0, %s133
    %s153 = sphi 0, %s155
    %s156 = sphi 0, %s153
    %s157 = sphi 0, %s156
    %s173 = sphi 0, %s157
  $region4: #{downblock_forward.1} parent=0 // loop_header_branch
    %15 = sbr.rel (%p13) target = $region8
  $region5: #{downblock_forward.1} parent=0 // loop_body
    %s17 = ssub.s32 %s12, 1
    %s18 = ssub.s32 %s12, 2
    %s19 = sadd.s32 %s12, 1
    %s20 = ssub.s32 %s12, %s19
    %p21 = scmp.eq.s32.totalorder %s20, 0
    %s23 = sadd.s32 %s22, 1
    %s24 = scalar_select %p21, %s22, %s23
    %p27 = pneg %p21
    %p28 = scmp.eq.s32.totalorder %s12, 1
    %p29 = por %p27, %p28
    %p30 = scmp.ne.s32.totalorder %s22, %s25
    %p31 = scmp.eq.s32.totalorder %s12, 0
    %p32 = por %p30, %p31
    %p33 = scmp.ne.s32.totalorder %s22, %s25
    %p34 = scmp.eq.s32.totalorder %s17, 1
    %p35 = por %p33, %p34
    %p36 = scmp.ne.s32.totalorder %s25, %s26
    %p37 = scmp.eq.s32.totalorder %s17, 0
    %p38 = por %p36, %p37
    %p39 = scmp.ne.s32.totalorder %s25, %s26
    %p40 = scmp.eq.s32.totalorder %s18, 1
    %p41 = por %p39, %p40
    %p43 = scmp.ne.s32.totalorder %s26, %s42
    %p44 = scmp.eq.s32.totalorder %s18, 0
    %p45 = por %p43, %p44
    %s47 = sadd.s32 %s46, 1
    %p50 = scmp.eq.s32.totalorder %s12, 1
    %p51 = scmp.ne.s32.totalorder %s46, %s48
    %p52 = scmp.eq.s32.totalorder %s12, 0
    %p53 = por %p51, %p52
    %p54 = scmp.ne.s32.totalorder %s46, %s48
    %p55 = scmp.eq.s32.totalorder %s17, 1
    %p56 = por %p54, %p55
    %p57 = scmp.ne.s32.totalorder %s48, %s49
    %p58 = scmp.eq.s32.totalorder %s17, 0
    %p59 = por %p57, %p58
    %p60 = scmp.ne.s32.totalorder %s48, %s49
    %p61 = scmp.eq.s32.totalorder %s18, 1
    %p62 = por %p60, %p61
    %p64 = scmp.ne.s32.totalorder %s49, %s63
    %p65 = scmp.eq.s32.totalorder %s18, 0
    %p66 = por %p64, %p65
    %s68 = sadd.s32 %s67, 1
    %p71 = scmp.eq.s32.totalorder %s12, 1
    %p72 = scmp.ne.s32.totalorder %s67, %s69
    %p73 = scmp.eq.s32.totalorder %s12, 0
    %p74 = por %p72, %p73
    %p75 = scmp.ne.s32.totalorder %s67, %s69
    %p76 = scmp.eq.s32.totalorder %s17, 1
    %p77 = por %p75, %p76
    %p78 = scmp.ne.s32.totalorder %s69, %s70
    %p79 = scmp.eq.s32.totalorder %s17, 0
    %p80 = por %p78, %p79
    %p81 = scmp.ne.s32.totalorder %s69, %s70
    %p82 = scmp.eq.s32.totalorder %s18, 1
    %p83 = por %p81, %p82
    %p85 = scmp.ne.s32.totalorder %s70, %s84
    %p86 = scmp.eq.s32.totalorder %s18, 0
    %p87 = por %p85, %p86
    %s89 = sadd.s32 %s88, 1
    %p92 = scmp.eq.s32.totalorder %s12, 1
    %p93 = scmp.ne.s32.totalorder %s88, %s90
    %p94 = scmp.eq.s32.totalorder %s12, 0
    %p95 = por %p93, %p94
    %p96 = scmp.ne.s32.totalorder %s88, %s90
    %p97 = scmp.eq.s32.totalorder %s17, 1
    %p98 = por %p96, %p97
    %p99 = scmp.ne.s32.totalorder %s90, %s91
    %p100 = scmp.eq.s32.totalorder %s17, 0
    %p101 = por %p99, %p100
    %p102 = scmp.ne.s32.totalorder %s90, %s91
    %p103 = scmp.eq.s32.totalorder %s18, 1
    %p104 = por %p102, %p103
    %p106 = scmp.ne.s32.totalorder %s91, %s105
    %p107 = scmp.eq.s32.totalorder %s18, 0
    %p108 = por %p106, %p107
    %s110 = sadd.s32 %s109, 1
    %p113 = scmp.eq.s32.totalorder %s12, 1
    %p114 = scmp.ne.s32.totalorder %s109, %s111
    %p115 = scmp.eq.s32.totalorder %s12, 0
    %p116 = por %p114, %p115
    %p117 = scmp.ne.s32.totalorder %s109, %s111
    %p118 = scmp.eq.s32.totalorder %s17, 1
    %p119 = por %p117, %p118
    %p120 = scmp.ne.s32.totalorder %s111, %s112
    %p121 = scmp.eq.s32.totalorder %s17, 0
    %p122 = por %p120, %p121
    %p123 = scmp.ne.s32.totalorder %s111, %s112
    %p124 = scmp.eq.s32.totalorder %s18, 1
    %p125 = por %p123, %p124
    %p127 = scmp.ne.s32.totalorder %s112, %s126
    %p128 = scmp.eq.s32.totalorder %s18, 0
    %p129 = por %p127, %p128
    %s131 = sadd.s32 %s130, 1
    %p134 = scmp.eq.s32.totalorder %s12, 1
    %p135 = scmp.ne.s32.totalorder %s130, %s132
    %p136 = scmp.eq.s32.totalorder %s12, 0
    %p137 = por %p135, %p136
    %p138 = scmp.ne.s32.totalorder %s130, %s132
    %p139 = scmp.eq.s32.totalorder %s17, 1
    %p140 = por %p138, %p139
    %p141 = scmp.ne.s32.totalorder %s132, %s133
    %p142 = scmp.eq.s32.totalorder %s17, 0
    %p143 = por %p141, %p142
    %p144 = scmp.ne.s32.totalorder %s132, %s133
    %p145 = scmp.eq.s32.totalorder %s18, 1
    %p146 = por %p144, %p145
    %p148 = scmp.ne.s32.totalorder %s133, %s147
    %p149 = scmp.eq.s32.totalorder %s18, 0
    %p150 = por %p148, %p149
    %s151 = ssub.s32 %s12, %s19
    %p152 = scmp.eq.s32.totalorder %s151, 0
    %s154 = sadd.s32 %s153, 1
    %s155 = scalar_select %p152, %s153, %s154
    %p158 = pneg %p152
    %p159 = scmp.eq.s32.totalorder %s12, 1
    %p160 = por %p158, %p159
    %p161 = scmp.ne.s32.totalorder %s153, %s156
    %p162 = scmp.eq.s32.totalorder %s12, 0
    %p163 = por %p161, %p162
    %p164 = scmp.ne.s32.totalorder %s153, %s156
    %p165 = scmp.eq.s32.totalorder %s17, 1
    %p166 = por %p164, %p165
    %p167 = scmp.ne.s32.totalorder %s156, %s157
    %p168 = scmp.eq.s32.totalorder %s17, 0
    %p169 = por %p167, %p168
    %p170 = scmp.ne.s32.totalorder %s156, %s157
    %p171 = scmp.eq.s32.totalorder %s18, 1
    %p172 = por %p170, %p171
    %p174 = scmp.ne.s32.totalorder %s157, %s173
    %p175 = scmp.eq.s32.totalorder %s18, 0
    %p176 = por %p174, %p175
    %p177 = scmp.le.s32.totalorder 1, %s12
    %p178 = scmp.lt.s32.totalorder %s12, 3
    %p179 = pnand %p177, %p178
    %p180 = pneg %p179
    // Predicated region
    $region9: #{downblock_forward.1} parent=5 // pred_check
      _
    $region10: #{downblock_forward.1} parent=5 // pred_check_branch
      %182 = sbr.rel (%p179) target = $region12
    $region11: #{downblock_forward.1} parent=5 // pred_region
      %s183 = ssub.s32 %s12, 1
      // Predicated region
      $region13: #{downblock_forward.1} parent=11 // pred_check
        %p184 = pneg %p59
      $region14: #{downblock_forward.1} parent=11 // pred_check_branch
        %186 = sbr.rel (%p184) target = $region16
      $region15: #{downblock_forward.1} parent=11 // pred_region
        _
      $region16: #{downblock_forward.1} parent=11 // pred_fallthru
        _
      // Predicated region
      $region17: #{downblock_forward.1} parent=11 // pred_check
        %p187 = pneg %p80
      $region18: #{downblock_forward.1} parent=11 // pred_check_branch
        %189 = sbr.rel (%p187) target = $region20
      $region19: #{downblock_forward.1} parent=11 // pred_region
        _
      $region20: #{downblock_forward.1} parent=11 // pred_fallthru
        _
      // Predicated region
      $region21: #{downblock_forward.1} parent=11 // pred_check
        %p190 = pneg %p101
      $region22: #{downblock_forward.1} parent=11 // pred_check_branch
        %192 = sbr.rel (%p190) target = $region24
      $region23: #{downblock_forward.1} parent=11 // pred_region
        _
      $region24: #{downblock_forward.1} parent=11 // pred_fallthru
        _
      // Predicated region
      $region25: #{downblock_forward.1} parent=11 // pred_check
        %p193 = pneg %p122
      $region26: #{downblock_forward.1} parent=11 // pred_check_branch
        %195 = sbr.rel (%p193) target = $region28
      $region27: #{downblock_forward.1} parent=11 // pred_region
        _
      $region28: #{downblock_forward.1} parent=11 // pred_fallthru
        _
      // Predicated region
      $region29: #{downblock_forward.1} parent=11 // pred_check
        %p196 = pneg %p143
      $region30: #{downblock_forward.1} parent=11 // pred_check_branch
        %198 = sbr.rel (%p196) target = $region32
      $region31: #{downblock_forward.1} parent=11 // pred_region
        _
      $region32: #{downblock_forward.1} parent=11 // pred_fallthru
        _
    $region12: #{downblock_forward.1} parent=5 // pred_fallthru
      _
    %p199 = scmp.lt.s32.totalorder %s12, 2
    // Predicated region
    $region33: #{downblock_forward.1} parent=5 // pred_check
      %p200 = pneg %p199
    $region34: #{downblock_forward.1} parent=5 // pred_check_branch
      %202 = sbr.rel (%p200) target = $region36
    $region35: #{downblock_forward.1} parent=5 // pred_region
      // Predicated region
      $region37: #{downblock_forward.1} parent=35 // pred_check
        %p203 = pneg %p32
      $region38: #{downblock_forward.1} parent=35 // pred_check_branch
        %205 = sbr.rel (%p203) target = $region40
      $region39: #{downblock_forward.1} parent=35 // pred_region
        %p206 = scmp.lt.s32.totalorder %s12, 1
        %s207 = scalar_select %p206, %s12, 1
        %s208 = smul.addr %s207, 8
        %s209 = smul.addr %s208, 8
        %s210 = scalar_lea.vmem %s0, %s209
      $region40: #{downblock_forward.1} parent=35 // pred_fallthru
        _
    $region36: #{downblock_forward.1} parent=5 // pred_fallthru
      _
    %p211 = scmp.le.s32.totalorder 1, %s12
    %p212 = scmp.lt.s32.totalorder %s12, 3
    %p213 = pnand %p211, %p212
    %p214 = pneg %p213
    // Predicated region
    $region41: #{downblock_forward.1} parent=5 // pred_check
      _
    $region42: #{downblock_forward.1} parent=5 // pred_check_branch
      %216 = sbr.rel (%p213) target = $region44
    $region43: #{downblock_forward.1} parent=5 // pred_region
      %s217 = ssub.s32 %s12, 1
      %p218 = scmp.lt.s32.totalorder %s17, 1
      %s219 = scalar_select %p218, %s17, 1
      %s220 = smul.addr %s219, 8
      %s221 = smul.addr %s220, 8
      %s222 = scalar_lea.vmem %s0, %s221
      %p223 = pneg %p38
      %p224 = pneg %p35
      %p225 = pneg %p59
      %p226 = pneg %p56
      %p227 = pneg %p80
      %p228 = pneg %p77
      %p229 = pneg %p101
      %p230 = pneg %p98
      %p231 = pneg %p122
      %p232 = pneg %p119
      %p233 = pneg %p143
      %p234 = pneg %p140
      %p235 = pneg %p169
      %p236 = pneg %p166
      %p237 = scmp.lt.s32.totalorder %s17, 1
      %s238 = scalar_select %p237, %s17, 1
      %s239 = smul.addr %s238, 4
      %s240 = smul.addr %s239, 8
      %s241 = scalar_lea.vmem %s6, %s240
      %p242 = scmp.lt.s32.totalorder %s17, 1
      %s243 = scalar_select %p242, %s17, 1
      %s244 = smul.addr %s243, 8
      %s245 = smul.addr %s244, 8
      %s246 = scalar_lea.vmem %s0, %s245
      %p247 = scmp.lt.s32.totalorder %s17, 1
      %s248 = scalar_select %p247, %s17, 1
      %s249 = smul.addr %s248, 4
      %s250 = smul.addr %s249, 8
      %s251 = scalar_lea.vmem %s6, %s250
      %v253 = vld [vmem:[%s246] sm:$0xff]
      %v254 = vld [vmem:[%s246 + $0x8] sm:$0xff]
      %v255 = vld [vmem:[%s246 + $0x10] sm:$0xff]
      %v256 = vld [vmem:[%s246 + $0x18] sm:$0xff]
      %v257 = vld [vmem:[%s246 + $0x20] sm:$0xff]
      %v258 = vld [vmem:[%s246 + $0x28] sm:$0xff]
      %v259 = vld [vmem:[%s246 + $0x30] sm:$0xff]
      %v260 = vld [vmem:[%s246 + $0x38] sm:$0xff]
      %v261 = vmax.f32 %v253, %v255
      %v262 = vmax.f32 %v254, %v256
      %v263 = vmax.f32 %v257, %v259
      %v264 = vmax.f32 %v258, %v260
      %v265 = vmax.f32 %v261, %v263
      %v266 = vmax.f32 %v262, %v264
      %v267 = vld [vmem:[%s1] sm:$0x3]
      %s268 = scalar_lea.vmem %s1, 2
      %v269 = vld [vmem:[%s268] sm:$0x3]
      %s270 = scalar_lea.vmem %s1, 4
      %v271 = vld [vmem:[%s270] sm:$0x3]
      %s272 = scalar_lea.vmem %s1, 6
      %v273 = vld [vmem:[%s272] sm:$0x3]
      %s274 = scalar_lea.vmem %s1, 8
      %v275 = vld [vmem:[%s274] sm:$0x3]
      %s276 = scalar_lea.vmem %s1, 10
      %v277 = vld [vmem:[%s276] sm:$0x3]
      %s278 = scalar_lea.vmem %s1, 12
      %v279 = vld [vmem:[%s278] sm:$0x3]
      %s280 = scalar_lea.vmem %s1, 14
      %v281 = vld [vmem:[%s280] sm:$0x3]
      %s282 = scalar_lea.vmem %s1, 16
      %v283 = vld [vmem:[%s282] sm:$0x3]
      %285 = vrot.lane.b32.xlu0 %v266, 17
      %v286 = vpop.permute.xlu0 %285
      %289 = vrot.lane.b32.xlu0 %v265, 17
      %v290 = vpop.permute.xlu0 %289
      %vm291 = vcmask 138240
      %v292 = vsel %vm291, %v290, %v286
      %v295 = vsel %vm291, %v286, %v290
      %v297 = vperm.slane %v267, 0
      %v298 = vperm.slane %v267, 1
      %v301 = vmul.f32 %v295, %v297
      %v302 = vmul.f32 %v292, %v298
      %303 = vrot.lane.b32.xlu0 %v266, 16
      %v304 = vpop.permute.xlu0 %303
      %306 = vrot.lane.b32.xlu0 %v265, 16
      %v307 = vpop.permute.xlu0 %306
      %vm308 = vcmask 130048
      %v309 = vsel %vm308, %v307, %v304
      %v312 = vsel %vm308, %v304, %v307
      %v314 = vperm.slane %v269, 0
      %v315 = vperm.slane %v269, 1
      %v318 = vmul.f32 %v312, %v314
      %v319 = vmul.f32 %v309, %v315
      %320 = vrot.lane.b32.xlu0 %v266, 15
      %v321 = vpop.permute.xlu0 %320
      %323 = vrot.lane.b32.xlu0 %v265, 15
      %v324 = vpop.permute.xlu0 %323
      %vm325 = vcmask 121856
      %v326 = vsel %vm325, %v324, %v321
      %v329 = vsel %vm325, %v321, %v324
      %v331 = vperm.slane %v271, 0
      %v332 = vperm.slane %v271, 1
      %v335 = vmul.f32 %v329, %v331
      %v336 = vmul.f32 %v326, %v332
      %337 = vrot.lane.b32.xlu0 %v266, 1
      %v338 = vpop.permute.xlu0 %337
      %340 = vrot.lane.b32.xlu0 %v265, 1
      %v341 = vpop.permute.xlu0 %340
      %vm342 = vcmask 7168
      %v343 = vsel %vm342, %v341, %v338
      %v346 = vsel %vm342, %v338, %v341
      %v348 = vperm.slane %v273, 0
      %v349 = vperm.slane %v273, 1
      %v352 = vmul.f32 %v346, %v348
      %v353 = vmul.f32 %v343, %v349
      %v355 = vperm.slane %v275, 0
      %v356 = vperm.slane %v275, 1
      %v359 = vmul.f32 %v265, %v355
      %v360 = vmul.f32 %v266, %v356
      %361 = vrot.lane.b32.xlu0 %v265, 127
      %v362 = vpop.permute.xlu0 %361
      %363 = vrot.lane.b32.xlu0 %v266, 127
      %v364 = vpop.permute.xlu0 %363
      %vm365 = vcmask 1039360
      %v366 = vsel %vm365, %v362, %v364
      %v370 = vsel %vm365, %v364, %v362
      %v372 = vperm.slane %v277, 0
      %v373 = vperm.slane %v277, 1
      %v376 = vmul.f32 %v366, %v372
      %v377 = vmul.f32 %v370, %v373
      %378 = vrot.lane.b32.xlu0 %v265, 113
      %v379 = vpop.permute.xlu0 %378
      %380 = vrot.lane.b32.xlu0 %v266, 113
      %v381 = vpop.permute.xlu0 %380
      %vm382 = vcmask 924672
      %v383 = vsel %vm382, %v379, %v381
      %v387 = vsel %vm382, %v381, %v379
      %v389 = vperm.slane %v279, 0
      %v390 = vperm.slane %v279, 1
      %v393 = vmul.f32 %v383, %v389
      %v394 = vmul.f32 %v387, %v390
      %395 = vrot.lane.b32.xlu0 %v265, 112
      %v396 = vpop.permute.xlu0 %395
      %397 = vrot.lane.b32.xlu0 %v266, 112
      %v398 = vpop.permute.xlu0 %397
      %vm399 = vcmask 916480
      %v400 = vsel %vm399, %v396, %v398
      %v404 = vsel %vm399, %v398, %v396
      %v406 = vperm.slane %v281, 0
      %v407 = vperm.slane %v281, 1
      %v410 = vmul.f32 %v400, %v406
      %v411 = vmul.f32 %v404, %v407
      %412 = vrot.lane.b32.xlu0 %v265, 111
      %v413 = vpop.permute.xlu0 %412
      %414 = vrot.lane.b32.xlu0 %v266, 111
      %v415 = vpop.permute.xlu0 %414
      %vm416 = vcmask 908288
      %v417 = vsel %vm416, %v413, %v415
      %v421 = vsel %vm416, %v415, %v413
      %v423 = vperm.slane %v283, 0
      %v424 = vperm.slane %v283, 1
      %v427 = vmul.f32 %v417, %v423
      %v428 = vmul.f32 %v421, %v424
      %v429 = vld [vmem:[%s2] sm:$0xf]
      %v430 = vld [vmem:[%s2 + $0x4] sm:$0xf]
      %v431 = vpack.c.bf16 %v318, %v301
      %v432 = vpack.c.bf16 %v319, %v302
      %v433 = vpack.c.bf16 %v352, %v335
      %v434 = vpack.c.bf16 %v353, %v336
      %v435 = vpack.c.bf16 %v376, %v359
      %v436 = vpack.c.bf16 %v377, %v360
      %v437 = vpack.c.bf16 %v410, %v393
      %v438 = vpack.c.bf16 %v411, %v394
      %v439 = vpack.c.bf16 %v427, %v427
      %v440 = vpack.c.bf16 %v428, %v428
      %v441 = vld [vmem:[%s3] sm:$0xff]
      %v442 = vld [vmem:[%s3 + $0x8] sm:$0xff]
      %444 = vset.pattern.permute.xlu0 0
      %445 = vperm.xlu0 %444, %v441
      %v446 = vpop.permute.xlu0 %445
      %449 = vset.pattern.permute.xlu0 0
      %450 = vperm.xlu0 %449, %v442
      %v451 = vpop.permute.xlu0 %450
      %v455 = vunpack.c.l.b16 %v429
      %v456 = vunpack.c.l.b16 %v430
      %v457 = vpack.c.b16 %v456, %v455
      %vm458 = vcmask 588800
      %v460 = vsel %vm458, %v457, 0
      %vm462 = vcmask 1043456
      %v464 = vsel %vm462, %v439, 0
      %v467 = vsel %vm462, %v440, 0
      %469 = vmatpush.bf16.msra.mxu0 0
      %470 = vmatpush.bf16.msra.mxu0 0
      %471 = vmatpush.bf16.msra.mxu0 0
      %472 = vmatpush.bf16.msra.mxu0 %v464
      %473 = vmatpush.bf16.msra.mxu0 %v437
      %474 = vmatpush.bf16.msra.mxu0 %v435
      %475 = vmatpush.bf16.msra.mxu0 %v433
      %476 = vmatpush.bf16.msra.mxu0 %v431
      %477 = vmatmul.bf16.gmra.mxu0 %v460
      %v478 = vpop.f32.mrf.mxu0
      %v479 = vadd.f32 %v446, %v478
      %v480 = vpop.f32.mrf.mxu0
      %v481 = vadd.f32 %v451, %v480
      %482 = vdwg.mxu0
      %483 = vmatpush.bf16.msra.mxu0 0
      %484 = vmatpush.bf16.msra.mxu0 0
      %485 = vmatpush.bf16.msra.mxu0 0
      %486 = vmatpush.bf16.msra.mxu0 %v467
      %487 = vmatpush.bf16.msra.mxu0 %v438
      %488 = vmatpush.bf16.msra.mxu0 %v436
      %489 = vmatpush.bf16.msra.mxu0 %v434
      %490 = vmatpush.bf16.msra.mxu0 %v432
      %491 = vmatmul.bf16.gmra.mxu0 %v460
      %v492 = vpop.f32.mrf.mxu0
      %v493 = vadd.f32 %v446, %v492
      %v494 = vpop.f32.mrf.mxu0
      %v495 = vadd.f32 %v451, %v494
      %496 = vdwg.mxu0
      %vm497 = vcmp.ge.f32.partialorder %v479, 0.0
      %vm498 = vcmp.ge.f32.partialorder %v493, 0.0
      %vm499 = vcmp.ge.f32.partialorder %v481, 0.0
      %vm500 = vcmp.ge.f32.partialorder %v495, 0.0
      %v501 = vmul.f32 %v479, 0.01
      %v502 = vmul.f32 %v493, 0.01
      %v503 = vmul.f32 %v481, 0.01
      %v504 = vmul.f32 %v495, 0.01
      %v505 = vsel %vm497, %v479, %v501
      %v506 = vsel %vm498, %v493, %v502
      %v507 = vsel %vm499, %v481, %v503
      %v508 = vsel %vm500, %v495, %v504
      %511 = vrot.lane.b32.xlu0 %v506, 17
      %v512 = vpop.permute.xlu0 %511
      %513 = vrot.lane.b32.xlu0 %v508, 17
      %v514 = vpop.permute.xlu0 %513
      %519 = vrot.lane.b32.xlu0 %v505, 17
      %v520 = vpop.permute.xlu0 %519
      %521 = vrot.lane.b32.xlu0 %v507, 17
      %v522 = vpop.permute.xlu0 %521
      %v523 = vsel %vm291, %v520, %v512
      %v524 = vsel %vm291, %v522, %v514
      %v529 = vsel %vm291, %v512, %v520
      %v530 = vsel %vm291, %v514, %v522
      %v531 = vmul.f32 %v529, %v297
      %v532 = vmul.f32 %v523, %v298
      %v533 = vmul.f32 %v530, %v297
      %v534 = vmul.f32 %v524, %v298
      %535 = vrot.lane.b32.xlu0 %v506, 16
      %v536 = vpop.permute.xlu0 %535
      %537 = vrot.lane.b32.xlu0 %v508, 16
      %v538 = vpop.permute.xlu0 %537
      %541 = vrot.lane.b32.xlu0 %v505, 16
      %v542 = vpop.permute.xlu0 %541
      %543 = vrot.lane.b32.xlu0 %v507, 16
      %v544 = vpop.permute.xlu0 %543
      %v545 = vsel %vm308, %v542, %v536
      %v546 = vsel %vm308, %v544, %v538
      %v551 = vsel %vm308, %v536, %v542
      %v552 = vsel %vm308, %v538, %v544
      %v553 = vmul.f32 %v551, %v314
      %v554 = vmul.f32 %v545, %v315
      %v555 = vmul.f32 %v552, %v314
      %v556 = vmul.f32 %v546, %v315
      %557 = vrot.lane.b32.xlu0 %v506, 15
      %v558 = vpop.permute.xlu0 %557
      %559 = vrot.lane.b32.xlu0 %v508, 15
      %v560 = vpop.permute.xlu0 %559
      %563 = vrot.lane.b32.xlu0 %v505, 15
      %v564 = vpop.permute.xlu0 %563
      %565 = vrot.lane.b32.xlu0 %v507, 15
      %v566 = vpop.permute.xlu0 %565
      %v567 = vsel %vm325, %v564, %v558
      %v568 = vsel %vm325, %v566, %v560
      %v573 = vsel %vm325, %v558, %v564
      %v574 = vsel %vm325, %v560, %v566
      %v575 = vmul.f32 %v573, %v331
      %v576 = vmul.f32 %v567, %v332
      %v577 = vmul.f32 %v574, %v331
      %v578 = vmul.f32 %v568, %v332
      %579 = vrot.lane.b32.xlu0 %v506, 1
      %v580 = vpop.permute.xlu0 %579
      %581 = vrot.lane.b32.xlu0 %v508, 1
      %v582 = vpop.permute.xlu0 %581
      %585 = vrot.lane.b32.xlu0 %v505, 1
      %v586 = vpop.permute.xlu0 %585
      %587 = vrot.lane.b32.xlu0 %v507, 1
      %v588 = vpop.permute.xlu0 %587
      %v589 = vsel %vm342, %v586, %v580
      %v590 = vsel %vm342, %v588, %v582
      %v595 = vsel %vm342, %v580, %v586
      %v596 = vsel %vm342, %v582, %v588
      %v597 = vmul.f32 %v595, %v348
      %v598 = vmul.f32 %v589, %v349
      %v599 = vmul.f32 %v596, %v348
      %v600 = vmul.f32 %v590, %v349
      %v601 = vmul.f32 %v505, %v355
      %v602 = vmul.f32 %v506, %v356
      %v603 = vmul.f32 %v507, %v355
      %v604 = vmul.f32 %v508, %v356
      %605 = vrot.lane.b32.xlu0 %v505, 127
      %v606 = vpop.permute.xlu0 %605
      %607 = vrot.lane.b32.xlu0 %v506, 127
      %v608 = vpop.permute.xlu0 %607
      %609 = vrot.lane.b32.xlu0 %v507, 127
      %v610 = vpop.permute.xlu0 %609
      %611 = vrot.lane.b32.xlu0 %v508, 127
      %v612 = vpop.permute.xlu0 %611
      %v613 = vsel %vm365, %v606, %v608
      %v614 = vsel %vm365, %v610, %v612
      %v621 = vsel %vm365, %v608, %v606
      %v622 = vsel %vm365, %v612, %v610
      %v623 = vmul.f32 %v613, %v372
      %v624 = vmul.f32 %v621, %v373
      %v625 = vmul.f32 %v614, %v372
      %v626 = vmul.f32 %v622, %v373
      %627 = vrot.lane.b32.xlu0 %v505, 113
      %v628 = vpop.permute.xlu0 %627
      %629 = vrot.lane.b32.xlu0 %v506, 113
      %v630 = vpop.permute.xlu0 %629
      %631 = vrot.lane.b32.xlu0 %v507, 113
      %v632 = vpop.permute.xlu0 %631
      %633 = vrot.lane.b32.xlu0 %v508, 113
      %v634 = vpop.permute.xlu0 %633
      %v635 = vsel %vm382, %v628, %v630
      %v636 = vsel %vm382, %v632, %v634
      %v643 = vsel %vm382, %v630, %v628
      %v644 = vsel %vm382, %v634, %v632
      %v645 = vmul.f32 %v635, %v389
      %v646 = vmul.f32 %v643, %v390
      %v647 = vmul.f32 %v636, %v389
      %v648 = vmul.f32 %v644, %v390
      %649 = vrot.lane.b32.xlu0 %v505, 112
      %v650 = vpop.permute.xlu0 %649
      %651 = vrot.lane.b32.xlu0 %v506, 112
      %v652 = vpop.permute.xlu0 %651
      %653 = vrot.lane.b32.xlu0 %v507, 112
      %v654 = vpop.permute.xlu0 %653
      %655 = vrot.lane.b32.xlu0 %v508, 112
      %v656 = vpop.permute.xlu0 %655
      %v657 = vsel %vm399, %v650, %v652
      %v658 = vsel %vm399, %v654, %v656
      %v665 = vsel %vm399, %v652, %v650
      %v666 = vsel %vm399, %v656, %v654
      %v667 = vmul.f32 %v657, %v406
      %v668 = vmul.f32 %v665, %v407
      %v669 = vmul.f32 %v658, %v406
      %v670 = vmul.f32 %v666, %v407
      %671 = vrot.lane.b32.xlu0 %v505, 111
      %v672 = vpop.permute.xlu0 %671
      %673 = vrot.lane.b32.xlu0 %v506, 111
      %v674 = vpop.permute.xlu0 %673
      %675 = vrot.lane.b32.xlu0 %v507, 111
      %v676 = vpop.permute.xlu0 %675
      %677 = vrot.lane.b32.xlu0 %v508, 111
      %v678 = vpop.permute.xlu0 %677
      %v679 = vsel %vm416, %v672, %v674
      %v680 = vsel %vm416, %v676, %v678
      %v687 = vsel %vm416, %v674, %v672
      %v688 = vsel %vm416, %v678, %v676
      %v689 = vmul.f32 %v679, %v423
      %v690 = vmul.f32 %v687, %v424
      %v691 = vmul.f32 %v680, %v423
      %v692 = vmul.f32 %v688, %v424
      %v693 = vld [vmem:[%s4] sm:$0xff]
      %v694 = vld [vmem:[%s4 + $0x8] sm:$0xff]
      %v695 = vpack.c.bf16 %v533, %v531
      %v696 = vpack.c.bf16 %v534, %v532
      %v697 = vpack.c.bf16 %v555, %v553
      %v698 = vpack.c.bf16 %v556, %v554
      %v699 = vpack.c.bf16 %v577, %v575
      %v700 = vpack.c.bf16 %v578, %v576
      %v701 = vpack.c.bf16 %v599, %v597
      %v702 = vpack.c.bf16 %v600, %v598
      %v703 = vpack.c.bf16 %v603, %v601
      %v704 = vpack.c.bf16 %v604, %v602
      %v705 = vpack.c.bf16 %v625, %v623
      %v706 = vpack.c.bf16 %v626, %v624
      %v707 = vpack.c.bf16 %v647, %v645
      %v708 = vpack.c.bf16 %v648, %v646
      %v709 = vpack.c.bf16 %v669, %v667
      %v710 = vpack.c.bf16 %v670, %v668
      %v711 = vpack.c.bf16 %v691, %v689
      %v712 = vpack.c.bf16 %v692, %v690
      %v713 = vld [vmem:[%s5] sm:$0xff]
      %v714 = vld [vmem:[%s5 + $0x8] sm:$0xff]
      %716 = vset.pattern.permute.xlu0 0
      %717 = vperm.xlu0 %716, %v713
      %v718 = vpop.permute.xlu0 %717
      %721 = vset.pattern.permute.xlu0 0
      %722 = vperm.xlu0 %721, %v714
      %v723 = vpop.permute.xlu0 %722
      %v727 = vunpack.c.l.b16 %v693
      %v728 = vunpack.c.h.b16 %v693
      %v729 = vunpack.c.l.b16 %v694
      %v730 = vunpack.c.h.b16 %v694
      %v731 = vpack.c.b16 %v729, %v727
      %v732 = vpack.c.b16 %v730, %v728
      %v735 = vsel %vm308, %v732, 0
      %737 = vmatpush.bf16.msra.mxu0 %v709
      %738 = vmatpush.bf16.msra.mxu0 %v707
      %739 = vmatpush.bf16.msra.mxu0 %v705
      %740 = vmatpush.bf16.msra.mxu0 %v703
      %741 = vmatpush.bf16.msra.mxu0 %v701
      %742 = vmatpush.bf16.msra.mxu0 %v699
      %743 = vmatpush.bf16.msra.mxu0 %v697
      %744 = vmatpush.bf16.msra.mxu0 %v695
      %745 = vmatmul.bf16.gmra.mxu0 %v731
      %v746 = vpop.f32.mrf.mxu0
      %v747 = vadd.f32 %v718, %v746
      %v748 = vpop.f32.mrf.mxu0
      %v749 = vadd.f32 %v723, %v748
      %750 = vdwg.mxu0
      %751 = vmatpush.bf16.msra.mxu0 0
      %752 = vmatpush.bf16.msra.mxu0 0
      %753 = vmatpush.bf16.msra.mxu0 0
      %754 = vmatpush.bf16.msra.mxu0 0
      %755 = vmatpush.bf16.msra.mxu0 0
      %756 = vmatpush.bf16.msra.mxu0 0
      %757 = vmatpush.bf16.msra.mxu0 0
      %758 = vmatpush.bf16.msra.mxu0 %v711
      %759 = vmatmul.bf16.gmra.mxu0 %v735
      %v760 = vpop.f32.mrf.mxu0
      %v761 = vadd.f32 %v747, %v760
      %v762 = vpop.f32.mrf.mxu0
      %v763 = vadd.f32 %v749, %v762
      %764 = vdwg.mxu0
      %765 = vmatpush.bf16.msra.mxu0 %v710
      %766 = vmatpush.bf16.msra.mxu0 %v708
      %767 = vmatpush.bf16.msra.mxu0 %v706
      %768 = vmatpush.bf16.msra.mxu0 %v704
      %769 = vmatpush.bf16.msra.mxu0 %v702
      %770 = vmatpush.bf16.msra.mxu0 %v700
      %771 = vmatpush.bf16.msra.mxu0 %v698
      %772 = vmatpush.bf16.msra.mxu0 %v696
      %773 = vmatmul.bf16.gmra.mxu0 %v731
      %v774 = vpop.f32.mrf.mxu0
      %v775 = vadd.f32 %v718, %v774
      %v776 = vpop.f32.mrf.mxu0
      %v777 = vadd.f32 %v723, %v776
      %778 = vdwg.mxu0
      %779 = vmatpush.bf16.msra.mxu0 0
      %780 = vmatpush.bf16.msra.mxu0 0
      %781 = vmatpush.bf16.msra.mxu0 0
      %782 = vmatpush.bf16.msra.mxu0 0
      %783 = vmatpush.bf16.msra.mxu0 0
      %784 = vmatpush.bf16.msra.mxu0 0
      %785 = vmatpush.bf16.msra.mxu0 0
      %786 = vmatpush.bf16.msra.mxu0 %v712
      %787 = vmatmul.bf16.gmra.mxu0 %v735
      %v788 = vpop.f32.mrf.mxu0
      %v789 = vadd.f32 %v775, %v788
      %v790 = vpop.f32.mrf.mxu0
      %v791 = vadd.f32 %v777, %v790
      %792 = vdwg.mxu0
      %vm793 = vcmp.ge.f32.partialorder %v761, 0.0
      %vm794 = vcmp.ge.f32.partialorder %v789, 0.0
      %vm795 = vcmp.ge.f32.partialorder %v763, 0.0
      %vm796 = vcmp.ge.f32.partialorder %v791, 0.0
      %v797 = vmul.f32 %v761, 0.01
      %v798 = vmul.f32 %v789, 0.01
      %v799 = vmul.f32 %v763, 0.01
      %v800 = vmul.f32 %v791, 0.01
      %v801 = vsel %vm793, %v761, %v797
      %v802 = vsel %vm794, %v789, %v798
      %v803 = vsel %vm795, %v763, %v799
      %v804 = vsel %vm796, %v791, %v800
      %805 = vst [vmem:[%s251] sm:$0xff] %v801
      %806 = vst [vmem:[%s251 + $0x8] sm:$0xff] %v802
      %807 = vst [vmem:[%s251 + $0x10] sm:$0xff] %v803
      %808 = vst [vmem:[%s251 + $0x18] sm:$0xff] %v804
      %p809 = scmp.lt.s32.totalorder %s17, 1
      %s810 = scalar_select %p809, %s17, 1
      %s811 = smul.addr %s810, 4
      %s812 = smul.addr %s811, 8
      %s813 = scalar_lea.vmem %s6, %s812
      // Predicated region
      $region45: #{downblock_forward.1} parent=43 // pred_check
        %p814 = pneg %p166
      $region46: #{downblock_forward.1} parent=43 // pred_check_branch
        %816 = sbr.rel (%p814) target = $region48
      $region47: #{downblock_forward.1} parent=43 // pred_region
        _
      $region48: #{downblock_forward.1} parent=43 // pred_fallthru
        _
    $region44: #{downblock_forward.1} parent=5 // pred_fallthru
      _
    %p817 = scmp.le.s32.totalorder 2, %s12
    // Predicated region
    $region49: #{downblock_forward.1} parent=5 // pred_check
      %p818 = pneg %p817
    $region50: #{downblock_forward.1} parent=5 // pred_check_branch
      %820 = sbr.rel (%p818) target = $region52
    $region51: #{downblock_forward.1} parent=5 // pred_region
      %s821 = ssub.s32 %s12, 2
      // Predicated region
      $region53: #{downblock_forward.1} parent=51 // pred_check
        %p822 = pneg %p172
      $region54: #{downblock_forward.1} parent=51 // pred_check_branch
        %824 = sbr.rel (%p822) target = $region56
      $region55: #{downblock_forward.1} parent=51 // pred_region
        %p825 = scmp.lt.s32.totalorder %s18, 1
        %s826 = scalar_select %p825, %s18, 1
        %s827 = smul.addr %s826, 4
        %s828 = smul.addr %s827, 8
        %s829 = scalar_lea.vmem %s6, %s828
      $region56: #{downblock_forward.1} parent=51 // pred_fallthru
        _
    $region52: #{downblock_forward.1} parent=5 // pred_fallthru
      _
  $region6: #{downblock_forward.1} parent=0 // loop_footer
    %s16 = sadd.s32 1, %s12
  $region7: #{downblock_forward.1} parent=0 // loop_footer_branch
    %11 = sbr.rel target = $region3
  $region8: #{downblock_forward.1} parent=0 // loop_exit
    _

</llo_original>
